<compile_context>
chip_gen: v7x
topology: tpu7x:2x2x1
jax: 0.10.0
libtpu: 0.0.40
codegen_flags: <defaults>
</compile_context>

<pallas_src>
import jax
import jax.numpy as jnp
import numpy as np
from jax.experimental import pallas as pl
from jax.experimental.pallas import tpu as pltpu

F_IN = 6          # input features of layer1
LANE = 128        # TPU lane width


def affine_kernel(w_ref, b_ref, x_ref, o_ref):
    # w_ref: SMEM (F_IN,) f32   b_ref: SMEM (1,) f32
    # x_ref: VMEM (F_IN, TILE_N) feature-major   o_ref: VMEM (1, TILE_N)
    x = x_ref[...]                          # (F_IN, TILE_N)
    acc = x[0:1, :] * w_ref[0]              # (1, TILE_N)  -- VPU FMA chain, no MXU
    for k in range(1, F_IN):                # static unroll: 6 scalar*vector FMAs
        acc = acc + x[k:k + 1, :] * w_ref[k]
    o_ref[...] = acc + b_ref[0]


def _round_up(a, b):
    return -(-a // b) * b


def monk_forward(x, params, tile_n=2048):
    """x: (N, 6) row-major (PyTorch layout). Returns (N, 1)."""
    w_eff, b_eff = params                   # (6,), (1,)
    n = x.shape[0]

    # Feature-major, lane-dense layout: lanes carry the batch dimension.
    tile = min(tile_n, _round_up(n, LANE))  # multiple of 128
    n_pad = _round_up(n, tile)
    xt = jnp.pad(x.T.astype(jnp.float32), ((0, 0), (0, n_pad - n)))  # (6, n_pad)

    grid = (n_pad // tile,)
    out = pl.pallas_call(
        affine_kernel,
        out_shape=jax.ShapeDtypeStruct((1, n_pad), jnp.float32),
        grid=grid,
        in_specs=[
            pl.BlockSpec(memory_space=pltpu.MemorySpace.SMEM),          # w_eff
            pl.BlockSpec(memory_space=pltpu.MemorySpace.SMEM),          # b_eff
            pl.BlockSpec((F_IN, tile), lambda i: (0, i)),               # x (6, tile)
        ],
        out_specs=pl.BlockSpec((1, tile), lambda i: (0, i)),            # lane-dense out
        compiler_params=pltpu.CompilerParams(
            dimension_semantics=("parallel",),
        ),
    )(w_eff, b_eff, xt)

    return out[:, :n].T                     # (N, 1)


def init_params(key):
    """PyTorch-default init for the two Linears + default BatchNorm1d state,
    folded into a single (6,)->(1,) affine: w_eff (6,), b_eff (1,)."""
    k1, k2, k3, k4 = jax.random.split(key, 4)
    in1, out1 = 6, 3
    in2, out2 = 3, 1
    bound1 = 1.0 / np.sqrt(in1)
    bound2 = 1.0 / np.sqrt(in2)
    w1 = jax.random.uniform(k1, (out1, in1), jnp.float32, -bound1, bound1)  # (3, 6)
    b1 = jax.random.uniform(k2, (out1,), jnp.float32, -bound1, bound1)      # (3,)
    w2 = jax.random.uniform(k3, (out2, in2), jnp.float32, -bound2, bound2)  # (1, 3)
    b2 = jax.random.uniform(k4, (out2,), jnp.float32, -bound2, bound2)      # (1,)

    # BatchNorm1d(3) defaults: gamma=1, beta=0, running_mean=0, running_var=1
    gamma = jnp.ones((out1,), jnp.float32)
    beta = jnp.zeros((out1,), jnp.float32)
    running_mean = jnp.zeros((out1,), jnp.float32)
    running_var = jnp.ones((out1,), jnp.float32)
    eps = 1e-5
    scale = gamma / jnp.sqrt(running_var + eps)     # (3,)
    shift = beta - running_mean * scale             # (3,)

    # Fold:  y = ((x @ w1.T + b1) * scale + shift) @ w2.T + b2
    #          = x @ [(w1.T * scale) @ w2.T]  +  [(b1*scale + shift) @ w2.T + b2]
    w_eff = ((w1.T * scale) @ w2.T).reshape(F_IN)   # (6,)
    b_eff = ((b1 * scale + shift) @ w2.T + b2).reshape(1)  # (1,)

    raw = (w1, b1, scale, shift, w2, b2)
    return (w_eff, b_eff), raw


def reference_forward(x, raw):
    """Un-folded eval-mode reference (mirrors the PyTorch module op-by-op)."""
    w1, b1, scale, shift, w2, b2 = raw
    h = x @ w1.T + b1          # layer1
    # dropout1: identity in eval mode
    h = h * scale + shift      # bn1 (running stats)
    return h @ w2.T + b2       # layer2


if __name__ == "__main__":
    key = jax.random.PRNGKey(0)
    kx, kp = jax.random.split(key)

    n_batch = 8                                    # small test shape
    x = jax.random.normal(kx, (n_batch, F_IN), jnp.float32)
    params, raw = init_params(kp)

    out = monk_forward(x, params)
    out = jax.block_until_ready(out)

    ref = reference_forward(x, raw)
    assert out.shape == (n_batch, 1), out.shape
    np.testing.assert_allclose(np.asarray(out), np.asarray(ref), rtol=1e-5, atol=1e-5)

    print("KERNEL_OK")
</pallas_src>

<mosaic_0001>
module attributes {stable_mosaic.version = 11 : i64} {
  func.func @affine_kernel(%arg0: i32, %arg1: memref<6xf32, #tpu.memory_space<smem>>, %arg2: memref<1xf32, #tpu.memory_space<smem>>, %arg3: memref<6x128xf32, #tpu.memory_space<vmem>>, %arg4: memref<1x128xf32, #tpu.memory_space<vmem>>) attributes {dimension_semantics = [#tpu.dimension_semantics<parallel>], iteration_bounds = array<i64: 1>, scalar_prefetch = 0 : i64, scratch_operands = 0 : i64, tpu.core_type = #tpu.core_type<tc>, window_params = [{transform_indices = @transform_0, window_bounds = array<i64: 6>}, {transform_indices = @transform_1, window_bounds = array<i64: 1>}, {transform_indices = @transform_2, window_bounds = array<i64: 6, 128>}, {transform_indices = @transform_3, window_bounds = array<i64: 1, 128>}]} {
    %c0 = arith.constant 0 : index
    %c0_0 = arith.constant 0 : index
    %0 = vector.load %arg3[%c0, %c0_0] : memref<6x128xf32, #tpu.memory_space<vmem>>, vector<6x128xf32>
    %1 = vector.extract_strided_slice %0 {offsets = [0, 0], sizes = [1, 128], strides = [1, 1]} : vector<6x128xf32> to vector<1x128xf32>
    %c0_1 = arith.constant 0 : index
    %2 = memref.load %arg1[%c0_1] : memref<6xf32, #tpu.memory_space<smem>>
    %3 = vector.broadcast %2 : f32 to vector<1x128xf32>
    %4 = arith.mulf %1, %3 : vector<1x128xf32>
    %5 = vector.extract_strided_slice %0 {offsets = [1, 0], sizes = [1, 128], strides = [1, 1]} : vector<6x128xf32> to vector<1x128xf32>
    %c1 = arith.constant 1 : index
    %6 = memref.load %arg1[%c1] : memref<6xf32, #tpu.memory_space<smem>>
    %7 = vector.broadcast %6 : f32 to vector<1x128xf32>
    %8 = arith.mulf %5, %7 : vector<1x128xf32>
    %9 = arith.addf %4, %8 : vector<1x128xf32>
    %10 = vector.extract_strided_slice %0 {offsets = [2, 0], sizes = [1, 128], strides = [1, 1]} : vector<6x128xf32> to vector<1x128xf32>
    %c2 = arith.constant 2 : index
    %11 = memref.load %arg1[%c2] : memref<6xf32, #tpu.memory_space<smem>>
    %12 = vector.broadcast %11 : f32 to vector<1x128xf32>
    %13 = arith.mulf %10, %12 : vector<1x128xf32>
    %14 = arith.addf %9, %13 : vector<1x128xf32>
    %15 = vector.extract_strided_slice %0 {offsets = [3, 0], sizes = [1, 128], strides = [1, 1]} : vector<6x128xf32> to vector<1x128xf32>
    %c3 = arith.constant 3 : index
    %16 = memref.load %arg1[%c3] : memref<6xf32, #tpu.memory_space<smem>>
    %17 = vector.broadcast %16 : f32 to vector<1x128xf32>
    %18 = arith.mulf %15, %17 : vector<1x128xf32>
    %19 = arith.addf %14, %18 : vector<1x128xf32>
    %20 = vector.extract_strided_slice %0 {offsets = [4, 0], sizes = [1, 128], strides = [1, 1]} : vector<6x128xf32> to vector<1x128xf32>
    %c4 = arith.constant 4 : index
    %21 = memref.load %arg1[%c4] : memref<6xf32, #tpu.memory_space<smem>>
    %22 = vector.broadcast %21 : f32 to vector<1x128xf32>
    %23 = arith.mulf %20, %22 : vector<1x128xf32>
    %24 = arith.addf %19, %23 : vector<1x128xf32>
    %25 = vector.extract_strided_slice %0 {offsets = [5, 0], sizes = [1, 128], strides = [1, 1]} : vector<6x128xf32> to vector<1x128xf32>
    %c5 = arith.constant 5 : index
    %26 = memref.load %arg1[%c5] : memref<6xf32, #tpu.memory_space<smem>>
    %27 = vector.broadcast %26 : f32 to vector<1x128xf32>
    %28 = arith.mulf %25, %27 : vector<1x128xf32>
    %29 = arith.addf %24, %28 : vector<1x128xf32>
    %c0_2 = arith.constant 0 : index
    %30 = memref.load %arg2[%c0_2] : memref<1xf32, #tpu.memory_space<smem>>
    %31 = vector.broadcast %30 : f32 to vector<1x128xf32>
    %32 = arith.addf %29, %31 : vector<1x128xf32>
    %c0_3 = arith.constant 0 : index
    %c0_4 = arith.constant 0 : index
    %33 = vector.load %arg4[%c0_3, %c0_4] : memref<1x128xf32, #tpu.memory_space<vmem>>, vector<1x128xf32>
    tpu.vector_store %arg4[%c0_3, %c0_4], %32 {strides = array<i32>} : memref<1x128xf32, #tpu.memory_space<vmem>>, vector<1x128xf32>,
    return
  }
  func.func @transform_0(%arg0: i32) -> i32 {
    %c0_i32 = arith.constant 0 : i32
    %c0_i32_0 = arith.constant 0 : i32
    return %c0_i32 : i32
  }
  func.func @transform_1(%arg0: i32) -> i32 {
    %c0_i32 = arith.constant 0 : i32
    %c0_i32_0 = arith.constant 0 : i32
    return %c0_i32 : i32
  }
  func.func @transform_2(%arg0: i32) -> (i32, i32) {
    %c0_i32 = arith.constant 0 : i32
    %c0_i32_0 = arith.constant 0 : i32
    return %c0_i32, %arg0 : i32, i32
  }
  func.func @transform_3(%arg0: i32) -> (i32, i32) {
    %c0_i32 = arith.constant 0 : i32
    %c0_i32_0 = arith.constant 0 : i32
    return %c0_i32, %arg0 : i32, i32
  }
}

</mosaic_0001>

<llo_original>
// kernel: tpu_custom_call.1
$region0: #{tpu_custom_call.1}
  #allocation0 [shape = 'u32[]', space=smem, size = 0x4, offset = 0x4, fixed_abs, tag = 'smem constant byte address 0x4 - core index']
  #allocation1 [shape = 'u32[144,128]{1,0:T(1,128)}', space=vmem, size = 0x12000, scoped, tag = 'internal scratch']
  #allocation2 [shape = 'f32[1]{0:T(128)S(6)}', space=smem, size = 0x200, scoped, tag = 'scoped memory for tpu_custom_call.1']
  %s0 = inlined_call_operand.vmem [shape: f32[6], index: 0, kind: input, shape index: {}]
  %s1 = inlined_call_operand.<no memory space> [shape: f32[1], index: 1, kind: input, shape index: {}]
  %s2 = inlined_call_operand.hbm [shape: f32[6,128], index: 2, kind: input, shape index: {}]
  %s3 = inlined_call_operand.hbm [shape: f32[1,128], index: 3, kind: output, shape index: {}]
  %s4 = sld [smem:[#allocation0]]
  $region30: #{tpu_custom_call.1} parent=0
    _
  %s6 = ssub.s32 1, %s4
  %s7 = scalar_select 0, %s6, %s4
  %8 = sst [smem:[#allocation2]] %s1
  $region1: #{tpu_custom_call.1} parent=0
    #allocation3 [shape = 'u8[512]{0}', space=smem, size = 0x200, scoped, tag = 'input window, operand 0, single buffered']
    #allocation4 [shape = 's32[1]{0}', space=sflag, size = 0x4, scoped, tag = 'scoped memory for tpu_custom_call.1']
    #allocation5 [shape = 's32[1]{0}', space=sflag, size = 0x4, scoped, tag = 'scoped memory for tpu_custom_call.1']
    #allocation6 [shape = 's32[1]{0}', space=sflag, size = 0x4, scoped, tag = 'scoped memory for tpu_custom_call.1']
    #allocation7 [shape = 'u8[4096]{0}', space=vmem, size = 0x1000, scoped, tag = 'input window, operand 2, single buffered']
    #allocation8 [shape = 'u8[512]{0}', space=vmem, size = 0x400, scoped, tag = 'output window, operand 0, single buffered']
    %9 = vsyncpa [#allocation6], 0
    %10 = vsyncpa [#allocation4], 0
    %11 = vsyncpa [#allocation5], 0
    // Predicated region
    $region2: #{tpu_custom_call.1} parent=1 // pred_check
      _
    $region3: #{tpu_custom_call.1} parent=1 // pred_check_branch
      %13 = sbr.rel (0) target = $region5
    $region4: #{tpu_custom_call.1} parent=1 // pred_region
      %s15 = ssub.s32 16, 16
      %16 = vsyncadd [#allocation6], %s15
      %s18 = sshll.u32 %s0, 4
      %s19 = int_to_ptr.vmem [resolvable:$true] %s18
      %21 = dma.vmem_to_smem %s19, 16, [#allocation3], [#allocation6]
    $region5: #{tpu_custom_call.1} parent=1 // pred_fallthru
      _
    // Predicated region
    $region6: #{tpu_custom_call.1} parent=1 // pred_check
      _
    $region7: #{tpu_custom_call.1} parent=1 // pred_check_branch
      %23 = sbr.rel (0) target = $region9
    $region8: #{tpu_custom_call.1} parent=1 // pred_region
      _
    $region9: #{tpu_custom_call.1} parent=1 // pred_fallthru
      _
    // Predicated region
    $region10: #{tpu_custom_call.1} parent=1 // pred_check
      _
    $region11: #{tpu_custom_call.1} parent=1 // pred_check_branch
      %25 = sbr.rel (0) target = $region13
    $region12: #{tpu_custom_call.1} parent=1 // pred_region
      %s27 = ssub.s32 128, 128
      %28 = vsyncadd [#allocation4], %s27
      %s30 = sshll.u32 [#allocation7], 4
      %s31 = int_to_ptr.vmem [resolvable:$true] %s30
      %33 = dma.hbm_to_vmem [thread:$0]  %s2, 128, %s31, [#allocation4]
    $region13: #{tpu_custom_call.1} parent=1 // pred_fallthru
      _
    // Predicated region
    $region14: #{tpu_custom_call.1} parent=1 // pred_check
      _
    $region15: #{tpu_custom_call.1} parent=1 // pred_check_branch
      %35 = sbr.rel (0) target = $region17
    $region16: #{tpu_custom_call.1} parent=1 // pred_region
      %36 = dma.done [#allocation6], 16
    $region17: #{tpu_custom_call.1} parent=1 // pred_fallthru
      _
    // Predicated region
    $region18: #{tpu_custom_call.1} parent=1 // pred_check
      _
    $region19: #{tpu_custom_call.1} parent=1 // pred_check_branch
      %38 = sbr.rel (0) target = $region21
    $region20: #{tpu_custom_call.1} parent=1 // pred_region
      %39 = dma.done [#allocation4], 128
    $region21: #{tpu_custom_call.1} parent=1 // pred_fallthru
      _
    %40 = sfence
    %v41 = vld [vmem:[#allocation7] sm:$0x3f]
    %s42 = sld [smem:[#allocation3]]
    %v43 = vstv %s42
    %v44 = vmul.f32 %v41, %v43
    %s45 = sld [smem:[#allocation3 + $0x1]]
    %v46 = vstv %s45
    %v47 = vmul.f32 %v41, %v46
    %v49 = vrot.slane %v47, 1
    %v51 = vadd.f32 %v44, %v49
    %s52 = sld [smem:[#allocation3 + $0x2]]
    %v53 = vstv %s52
    %v54 = vmul.f32 %v41, %v53
    %v56 = vrot.slane %v54, 2
    %v58 = vadd.f32 %v51, %v56
    %s59 = sld [smem:[#allocation3 + $0x3]]
    %v60 = vstv %s59
    %v61 = vmul.f32 %v41, %v60
    %v63 = vrot.slane %v61, 3
    %v65 = vadd.f32 %v58, %v63
    %s66 = sld [smem:[#allocation3 + $0x4]]
    %v67 = vstv %s66
    %v68 = vmul.f32 %v41, %v67
    %v70 = vrot.slane %v68, 4
    %v72 = vadd.f32 %v65, %v70
    %s73 = sld [smem:[#allocation3 + $0x5]]
    %v74 = vstv %s73
    %v75 = vmul.f32 %v41, %v74
    %v77 = vrot.slane %v75, 5
    %v79 = vadd.f32 %v72, %v77
    %s80 = sld [smem:[#allocation2]]
    %v81 = vstv %s80
    %v82 = vadd.f32 %v79, %v81
    %83 = vst [vmem:[#allocation8] sm:$0x1] %v82
    // Predicated region
    $region22: #{tpu_custom_call.1} parent=1 // pred_check
      _
    $region23: #{tpu_custom_call.1} parent=1 // pred_check_branch
      %85 = sbr.rel (0) target = $region25
    $region24: #{tpu_custom_call.1} parent=1 // pred_region
      %s87 = ssub.s32 16, 16
      %88 = vsyncadd [#allocation5], %s87
      %s90 = sshll.u32 [#allocation8], 4
      %s91 = int_to_ptr.vmem [resolvable:$true] %s90
      %93 = dma.vmem_to_hbm [thread:$0]  %s91, 16, %s3, [#allocation5]
    $region25: #{tpu_custom_call.1} parent=1 // pred_fallthru
      _
    // Predicated region
    $region26: #{tpu_custom_call.1} parent=1 // pred_check
      _
    $region27: #{tpu_custom_call.1} parent=1 // pred_check_branch
      %95 = sbr.rel (0) target = $region29
    $region28: #{tpu_custom_call.1} parent=1 // pred_region
      %96 = dma.done [#allocation5], 16
    $region29: #{tpu_custom_call.1} parent=1 // pred_fallthru
      _
    %97 = vsyncpa [#allocation4], 1
    %98 = vsyncpa [#allocation5], 1
    %99 = vsyncpa [#allocation6], 1

</llo_original>
